<compile_context>
chip_gen: v7x
topology: tpu7x:2x2x1
jax: 0.10.0
libtpu: 0.0.40
codegen_flags: <defaults>
</compile_context>

<pallas_src>
import functools

import jax
import jax.numpy as jnp
from jax import lax
from jax.experimental import pallas as pl
from jax.experimental.pallas import tpu as pltpu

_LANE = 128
_SUB = 8


def _cdiv(a, b):
    return -(-a // b)


# --------------------------------------------------------------------------
# chip / VMEM introspection (guarded — falls back to conservative settings).
# --------------------------------------------------------------------------
def _chip_info():
    try:
        kind = jax.devices()[0].device_kind.lower()
    except Exception:
        kind = ""
    is_v7x = ("v7" in kind) or ("7x" in kind)
    return is_v7x, (2 if is_v7x else 1)


def _vmem_capacity_bytes():
    fn = getattr(pltpu, "get_tpu_info", None)
    if fn is None:
        return None
    try:
        return getattr(fn(), "vmem_capacity_bytes", None)
    except Exception:
        return None


def _vmem_budget_bytes(is_v7x):
    """Returns (pipeline budget for tile sizing, vmem_limit_bytes)."""
    cap = _vmem_capacity_bytes()
    if is_v7x or (cap is not None and cap <= 64 * 1024 * 1024):
        return 28 * 1024 * 1024, 48 * 1024 * 1024      # v7x: 64 MiB physical
    if cap is None:
        return 30 * 1024 * 1024, 64 * 1024 * 1024      # unknown: stay modest
    return 60 * 1024 * 1024, 96 * 1024 * 1024          # v5e / v6e: 128 MiB


# --------------------------------------------------------------------------
# tiling
# --------------------------------------------------------------------------
def _choose_tiling(R0, N, C, x_bytes, t_bytes, n_cores, budget_bytes,
                   tile_rows_cap=None, force_splits=None):
    """Returns (tile_rows, n_splits, tiles_per_split, rows_covered_by_grid)."""
    # dtype-aware sublane alignment: 8 rows for f32, 16 for bf16, 32 for int8.
    sub_align = (_SUB * 4) // min(x_bytes, t_bytes, 4)
    # VMEM per tile row: 2 double-buffered input blocks + ~8 f32 working temps.
    per_row = N * C * _LANE * (2 * (x_bytes + t_bytes) + 8 * 4)
    tR_cap = max(sub_align, (budget_bytes // per_row) // sub_align * sub_align)
    if tile_rows_cap is not None:  # test hook
        tR_cap = max(sub_align,
                     min(tR_cap, _cdiv(tile_rows_cap, sub_align) * sub_align))

    if force_splits is not None:   # test hook
        n_splits = force_splits
    else:
        n_splits = 2 if (n_cores >= 2 and R0 >= 4 * sub_align) else 1

    if n_splits == 1 and R0 <= min(tR_cap, 64):
        # whole volume in one tile: block dim == full dim, no alignment, no
        # row padding and no mask needed.
        return R0, 1, 1, R0

    rows_per_split = _cdiv(_cdiv(R0, n_splits), sub_align) * sub_align
    tiles = _cdiv(rows_per_split, tR_cap)
    tR = _cdiv(_cdiv(rows_per_split, tiles), sub_align) * sub_align
    return tR, n_splits, tiles, n_splits * tiles * tR


# --------------------------------------------------------------------------
# kernel
# --------------------------------------------------------------------------
def _wftl_partial_kernel(x_ref, t_ref, pt_ref, p_ref, ts_ref,
                         acc_pt, acc_p, acc_t, *,
                         valid_rows, tiles_per_split, need_row_mask):
    sp = pl.program_id(0)          # spatial split (CORE_PARALLEL on v7x)
    s = pl.program_id(1)           # tile within the split (reduction axis)

    @pl.when(s == 0)
    def _():
        acc_pt[...] = jnp.zeros_like(acc_pt)
        acc_p[...] = jnp.zeros_like(acc_p)
        acc_t[...] = jnp.zeros_like(acc_t)

    x = x_ref[...].astype(jnp.float32)   # (N, C, tR, 128)
    t = t_ref[...].astype(jnp.float32)   # (N, C, tR, 128)

    # softmax over channels (non-minor axis): VPU max/add + EUP exp, no XLU.
    m = jnp.max(x, axis=1, keepdims=True)
    e = jnp.exp(x - m)
    p = e * pl.reciprocal(jnp.sum(e, axis=1, keepdims=True), approx=False)

    n, c, tR, L = x_ref.shape
    if need_row_mask:
        # the grid overshoots the row extent: zero the OOB rows of the ragged
        # last tile (row-only mask: one iota, one compare, two selects).
        r_idx = lax.broadcasted_iota(jnp.int32, (tR, L), 0)
        row0 = (sp * tiles_per_split + s) * tR
        valid = (row0 + r_idx) < valid_rows
        p = jnp.where(valid[None, None], p, 0.0)
        t = jnp.where(valid[None, None], t, 0.0)

    a_rows = acc_pt.shape[2]

    def fold(a):
        # (N, C, tR, 128) -> (N, C, a_rows, 128): sublane-group sum.
        # The reshape splits the sublane axis on an 8-row boundary (free
        # view); the sum is over a non-minor axis (pure VPU vreg adds).
        if tR == a_rows:
            return a
        return jnp.sum(a.reshape(n, c, tR // a_rows, a_rows, L), axis=2)

    acc_pt[...] += fold(p * t)
    acc_p[...] += fold(p)
    acc_t[...] += fold(t)

    @pl.when(s == pl.num_programs(1) - 1)
    def _():
        def tile_sum(a):               # (N, C, a_rows, 128) -> (N, C)
            return jnp.sum(jnp.sum(a, axis=-1), axis=-1)
        pt_ref[...] = tile_sum(acc_pt[...])[None]
        p_ref[...] = tile_sum(acc_p[...])[None]
        ts_ref[...] = tile_sum(acc_t[...])[None]


# --------------------------------------------------------------------------
# wrapper
# --------------------------------------------------------------------------
def weighted_focal_tversky_loss(inputs, targets, weights, smooth=1e-6,
                                alpha=0.7, beta=0.3, gamma=0.75,
                                _tile_rows_cap=None, _force_splits=None):
    """inputs/targets: (N, C, D, H, W); weights: (C,). Returns scalar loss."""
    N, C, D, H, W = inputs.shape
    S = D * H * W
    R0 = _cdiv(S, _LANE)
    S_ceil = R0 * _LANE

    is_v7x, n_cores = _chip_info()
    budget, vmem_limit = _vmem_budget_bytes(is_v7x)

    tR, n_splits, tiles, R_grid = _choose_tiling(
        R0, N, C, inputs.dtype.itemsize, targets.dtype.itemsize,
        n_cores, budget, tile_rows_cap=_tile_rows_cap,
        force_splits=_force_splits)

    x = inputs.reshape(N, C, S)
    t = targets.reshape(N, C, S)
    if S_ceil != S:
        # TODO(synk): lane-unaligned volumes still pay one jnp.pad round trip;
        # a manual pl.ANY tail DMA would remove it but is not worth the risk.
        pad = ((0, 0), (0, 0), (0, S_ceil - S))
        x = jnp.pad(x, pad)
        t = jnp.pad(t, pad)
    x = x.reshape(N, C, R0, _LANE)   # zero-copy when S is lane-aligned
    t = t.reshape(N, C, R0, _LANE)

    need_row_mask = (R_grid != R0)
    acc_rows = tR if (tR % _SUB) else _SUB

    kernel = functools.partial(_wftl_partial_kernel, valid_rows=R0,
                               tiles_per_split=tiles,
                               need_row_mask=need_row_mask)

    # clamp the row-block index so a (rare) fully-OOB trailing block just
    # re-reads the last valid block — its contribution is zeroed by the mask.
    last_blk = max(_cdiv(R0, tR) - 1, 0)
    in_map = lambda sp, s, T=tiles, LB=last_blk: (
        0, 0, jnp.minimum(sp * T + s, LB), 0)
    out_map = lambda sp, s: (sp, 0, 0)
    part_shape = jax.ShapeDtypeStruct((n_splits, N, C), jnp.float32)

    if n_splits > 1 and n_cores >= 2:
        sp_sem = getattr(pltpu, "CORE_PARALLEL", "parallel")
        rd_sem = getattr(pltpu, "ARBITRARY", "arbitrary")
    else:
        sp_sem, rd_sem = "arbitrary", "arbitrary"

    pt_parts, p_parts, t_parts = pl.pallas_call(
        kernel,
        out_shape=(part_shape, part_shape, part_shape),
        grid_spec=pltpu.PrefetchScalarGridSpec(
            num_scalar_prefetch=0,
            grid=(n_splits, tiles),
            in_specs=[
                pl.BlockSpec((N, C, tR, _LANE), in_map),
                pl.BlockSpec((N, C, tR, _LANE), in_map),
            ],
            out_specs=[
                pl.BlockSpec((1, N, C), out_map),
                pl.BlockSpec((1, N, C), out_map),
                pl.BlockSpec((1, N, C), out_map),
            ],
            scratch_shapes=[
                pltpu.VMEM((N, C, acc_rows, _LANE), jnp.float32),  # Σ(p·t)
                pltpu.VMEM((N, C, acc_rows, _LANE), jnp.float32),  # Σp
                pltpu.VMEM((N, C, acc_rows, _LANE), jnp.float32),  # Σt
            ],
        ),
        compiler_params=pltpu.CompilerParams(
            dimension_semantics=(sp_sem, rd_sem),
            vmem_limit_bytes=vmem_limit,
        ),
    )(x, t)

    # tiny finalize in plain JAX (combines per-split partial sums).
    tp = jnp.sum(pt_parts, axis=0)                        # TP = Σ(p·t)
    # lane-padded logits are zero -> softmax there is exactly 1/C: subtract
    # that contribution algebraically instead of masking in the hot loop.
    sum_p = jnp.sum(p_parts, axis=0) - (S_ceil - S) / C
    sum_t = jnp.sum(t_parts, axis=0)
    fp = sum_p - tp                                       # FP = Σp − TP
    fn = sum_t - tp                                       # FN = Σt − TP
    w = weights.astype(jnp.float32)
    tversky = (tp + smooth) / (tp + alpha * fp + beta * fn + smooth)
    wsum = jnp.sum(w[None, :] * tversky)
    # NOTE: (1 - wsum)**gamma is NaN if wsum > 1 — matches the PyTorch module.
    return (1.0 - wsum) ** gamma


def _reference(inputs, targets, weights, smooth=1e-6, alpha=0.7, beta=0.3,
               gamma=0.75):
    p = jax.nn.softmax(inputs.astype(jnp.float32), axis=1)
    t = targets.astype(jnp.float32)
    tp = jnp.sum(p * t, axis=(2, 3, 4))
    fp = jnp.sum((1 - t) * p, axis=(2, 3, 4))
    fn = jnp.sum(t * (1 - p), axis=(2, 3, 4))
    wt = jnp.sum(weights[None, :] * ((tp + smooth) /
                                     (tp + alpha * fp + beta * fn + smooth)))
    return (1.0 - wt) ** gamma


if __name__ == "__main__":
    key = jax.random.PRNGKey(0)

    def make_case(k, N, C, D, H, W, dtype=jnp.float32):
        k_x, k_lbl = jax.random.split(k)
        x = jax.random.normal(k_x, (N, C, D, H, W), dtype=jnp.float32)
        x = x.astype(dtype)
        labels = jax.random.randint(k_lbl, (N, D, H, W), 0, C)
        t = jax.nn.one_hot(labels, C, axis=1, dtype=dtype)  # (N, C, D, H, W)
        return x, t

    # per-class weights kept small so (1 - weighted sum) stays positive,
    # matching the module's semantics without NaN from (-x)**0.75.
    weights = jnp.array([0.05, 0.10, 0.15, 0.20], dtype=jnp.float32)
    ks = jax.random.split(key, 4)

    cases = [
        # 1) small lane-aligned volume: single tile, no pad, no mask.
        make_case(ks[0], 2, 4, 4, 8, 8) + ({},),
        # 2) lane-aligned, R0 = 33 (not a multiple of 8): still one full-dim
        #    tile, no pad, no mask.
        make_case(ks[1], 2, 4, 4, 32, 33) + ({},),
        # 3) lane-unaligned volume: pad + algebraic Σp correction.
        make_case(ks[2], 2, 4, 3, 5, 7) + ({},),
        # 4) bf16 inputs, multi-tile grid with the row mask and a forced
        #    2-way split (serial on 1-TC chips, both cores on v7x).
        make_case(ks[3], 2, 4, 10, 16, 16, dtype=jnp.bfloat16)
        + ({"_tile_rows_cap": 8, "_force_splits": 2},),
    ]

    for i, (x, t, kw) in enumerate(cases):
        out = jax.block_until_ready(
            weighted_focal_tversky_loss(x, t, weights, **kw))
        ref = _reference(x, t, weights)
        assert jnp.allclose(out, ref, atol=1e-4, rtol=1e-4), (i, out, ref)

    print("KERNEL_OK")
</pallas_src>

<mosaic_0001>
module attributes {stable_mosaic.version = 11 : i64} {
  func.func @_wftl_partial_kernel(%arg0: i32, %arg1: i32, %arg2: memref<2x4x2x128xf32, #tpu.memory_space<vmem>>, %arg3: memref<2x4x2x128xf32, #tpu.memory_space<vmem>>, %arg4: memref<1x2x4xf32, #tpu.memory_space<vmem>>, %arg5: memref<1x2x4xf32, #tpu.memory_space<vmem>>, %arg6: memref<1x2x4xf32, #tpu.memory_space<vmem>>, %arg7: memref<2x4x2x128xf32, #tpu.memory_space<vmem>>, %arg8: memref<2x4x2x128xf32, #tpu.memory_space<vmem>>, %arg9: memref<2x4x2x128xf32, #tpu.memory_space<vmem>>) attributes {dimension_semantics = [#tpu.dimension_semantics<arbitrary>, #tpu.dimension_semantics<arbitrary>], iteration_bounds = array<i64: 1, 1>, scalar_prefetch = 0 : i64, scratch_operands = 3 : i64, tpu.core_type = #tpu.core_type<tc>, window_params = [{transform_indices = @transform_0, window_bounds = array<i64: 2, 4, 2, 128>}, {transform_indices = @transform_1, window_bounds = array<i64: 2, 4, 2, 128>}, {transform_indices = @transform_2, window_bounds = array<i64: 1, 2, 4>}, {transform_indices = @transform_3, window_bounds = array<i64: 1, 2, 4>}, {transform_indices = @transform_4, window_bounds = array<i64: 1, 2, 4>}]} {
    %c0_i32 = arith.constant 0 : i32
    %0 = arith.cmpi eq, %arg1, %c0_i32 : i32
    %1 = arith.extui %0 : i1 to i32
    %c0_i32_0 = arith.constant 0 : i32
    %2 = arith.cmpi ne, %1, %c0_i32_0 : i32
    scf.if %2 {
      %cst_35 = arith.constant 0.000000e+00 : f32
      %28 = vector.broadcast %cst_35 : f32 to vector<2x4x2x128xf32>
      %c0_36 = arith.constant 0 : index
      %c0_37 = arith.constant 0 : index
      %c0_38 = arith.constant 0 : index
      %c0_39 = arith.constant 0 : index
      %29 = vector.load %arg7[%c0_36, %c0_37, %c0_38, %c0_39] : memref<2x4x2x128xf32, #tpu.memory_space<vmem>>, vector<2x4x2x128xf32>
      tpu.vector_store %arg7[%c0_36, %c0_37, %c0_38, %c0_39], %28 {strides = array<i32>} : memref<2x4x2x128xf32, #tpu.memory_space<vmem>>, vector<2x4x2x128xf32>,
      %cst_40 = arith.constant 0.000000e+00 : f32
      %30 = vector.broadcast %cst_40 : f32 to vector<2x4x2x128xf32>
      %c0_41 = arith.constant 0 : index
      %c0_42 = arith.constant 0 : index
      %c0_43 = arith.constant 0 : index
      %c0_44 = arith.constant 0 : index
      %31 = vector.load %arg8[%c0_41, %c0_42, %c0_43, %c0_44] : memref<2x4x2x128xf32, #tpu.memory_space<vmem>>, vector<2x4x2x128xf32>
      tpu.vector_store %arg8[%c0_41, %c0_42, %c0_43, %c0_44], %30 {strides = array<i32>} : memref<2x4x2x128xf32, #tpu.memory_space<vmem>>, vector<2x4x2x128xf32>,
      %cst_45 = arith.constant 0.000000e+00 : f32
      %32 = vector.broadcast %cst_45 : f32 to vector<2x4x2x128xf32>
      %c0_46 = arith.constant 0 : index
      %c0_47 = arith.constant 0 : index
      %c0_48 = arith.constant 0 : index
      %c0_49 = arith.constant 0 : index
      %33 = vector.load %arg9[%c0_46, %c0_47, %c0_48, %c0_49] : memref<2x4x2x128xf32, #tpu.memory_space<vmem>>, vector<2x4x2x128xf32>
      tpu.vector_store %arg9[%c0_46, %c0_47, %c0_48, %c0_49], %32 {strides = array<i32>} : memref<2x4x2x128xf32, #tpu.memory_space<vmem>>, vector<2x4x2x128xf32>,
    } else {
    }
    %c0 = arith.constant 0 : index
    %c0_1 = arith.constant 0 : index
    %c0_2 = arith.constant 0 : index
    %c0_3 = arith.constant 0 : index
    %3 = vector.load %arg2[%c0, %c0_1, %c0_2, %c0_3] : memref<2x4x2x128xf32, #tpu.memory_space<vmem>>, vector<2x4x2x128xf32>
    %c0_4 = arith.constant 0 : index
    %c0_5 = arith.constant 0 : index
    %c0_6 = arith.constant 0 : index
    %c0_7 = arith.constant 0 : index
    %4 = vector.load %arg3[%c0_4, %c0_5, %c0_6, %c0_7] : memref<2x4x2x128xf32, #tpu.memory_space<vmem>>, vector<2x4x2x128xf32>
    %cst = arith.constant dense<0xFF800000> : vector<2x2x128xf32>
    %5 = vector.multi_reduction <maximumf>, %3, %cst [1] : vector<2x4x2x128xf32> to vector<2x2x128xf32>
    %6 = vector.shape_cast %5 : vector<2x2x128xf32> to vector<2x1x2x128xf32>
    %7 = vector.broadcast %6 : vector<2x1x2x128xf32> to vector<2x4x2x128xf32>
    %8 = arith.subf %3, %7 : vector<2x4x2x128xf32>
    %9 = math.exp %8 : vector<2x4x2x128xf32>
    %cst_8 = arith.constant dense<0.000000e+00> : vector<2x2x128xf32>
    %10 = vector.multi_reduction <add>, %9, %cst_8 [1] : vector<2x4x2x128xf32> to vector<2x2x128xf32>
    %11 = vector.shape_cast %10 : vector<2x2x128xf32> to vector<2x1x2x128xf32>
    %12 = tpu.reciprocal %11 : vector<2x1x2x128xf32> -> vector<2x1x2x128xf32>
    %13 = vector.broadcast %12 : vector<2x1x2x128xf32> to vector<2x4x2x128xf32>
    %14 = arith.mulf %9, %13 : vector<2x4x2x128xf32>
    %c0_9 = arith.constant 0 : index
    %c0_10 = arith.constant 0 : index
    %c0_11 = arith.constant 0 : index
    %c0_12 = arith.constant 0 : index
    %15 = vector.load %arg7[%c0_9, %c0_10, %c0_11, %c0_12] : memref<2x4x2x128xf32, #tpu.memory_space<vmem>>, vector<2x4x2x128xf32>
    %16 = arith.mulf %14, %4 : vector<2x4x2x128xf32>
    %17 = arith.addf %15, %16 : vector<2x4x2x128xf32>
    %c0_13 = arith.constant 0 : index
    %c0_14 = arith.constant 0 : index
    %c0_15 = arith.constant 0 : index
    %c0_16 = arith.constant 0 : index
    %18 = vector.load %arg7[%c0_13, %c0_14, %c0_15, %c0_16] : memref<2x4x2x128xf32, #tpu.memory_space<vmem>>, vector<2x4x2x128xf32>
    tpu.vector_store %arg7[%c0_13, %c0_14, %c0_15, %c0_16], %17 {strides = array<i32>} : memref<2x4x2x128xf32, #tpu.memory_space<vmem>>, vector<2x4x2x128xf32>,
    %c0_17 = arith.constant 0 : index
    %c0_18 = arith.constant 0 : index
    %c0_19 = arith.constant 0 : index
    %c0_20 = arith.constant 0 : index
    %19 = vector.load %arg8[%c0_17, %c0_18, %c0_19, %c0_20] : memref<2x4x2x128xf32, #tpu.memory_space<vmem>>, vector<2x4x2x128xf32>
    %20 = arith.addf %19, %14 : vector<2x4x2x128xf32>
    %c0_21 = arith.constant 0 : index
    %c0_22 = arith.constant 0 : index
    %c0_23 = arith.constant 0 : index
    %c0_24 = arith.constant 0 : index
    %21 = vector.load %arg8[%c0_21, %c0_22, %c0_23, %c0_24] : memref<2x4x2x128xf32, #tpu.memory_space<vmem>>, vector<2x4x2x128xf32>
    tpu.vector_store %arg8[%c0_21, %c0_22, %c0_23, %c0_24], %20 {strides = array<i32>} : memref<2x4x2x128xf32, #tpu.memory_space<vmem>>, vector<2x4x2x128xf32>,
    %c0_25 = arith.constant 0 : index
    %c0_26 = arith.constant 0 : index
    %c0_27 = arith.constant 0 : index
    %c0_28 = arith.constant 0 : index
    %22 = vector.load %arg9[%c0_25, %c0_26, %c0_27, %c0_28] : memref<2x4x2x128xf32, #tpu.memory_space<vmem>>, vector<2x4x2x128xf32>
    %23 = arith.addf %22, %4 : vector<2x4x2x128xf32>
    %c0_29 = arith.constant 0 : index
    %c0_30 = arith.constant 0 : index
    %c0_31 = arith.constant 0 : index
    %c0_32 = arith.constant 0 : index
    %24 = vector.load %arg9[%c0_29, %c0_30, %c0_31, %c0_32] : memref<2x4x2x128xf32, #tpu.memory_space<vmem>>, vector<2x4x2x128xf32>
    tpu.vector_store %arg9[%c0_29, %c0_30, %c0_31, %c0_32], %23 {strides = array<i32>} : memref<2x4x2x128xf32, #tpu.memory_space<vmem>>, vector<2x4x2x128xf32>,
    %c0_i32_33 = arith.constant 0 : i32
    %25 = arith.cmpi eq, %arg1, %c0_i32_33 : i32
    %26 = arith.extui %25 : i1 to i32
    %c0_i32_34 = arith.constant 0 : i32
    %27 = arith.cmpi ne, %26, %c0_i32_34 : i32
    scf.if %27 {
      %c0_35 = arith.constant 0 : index
      %c0_36 = arith.constant 0 : index
      %c0_37 = arith.constant 0 : index
      %c0_38 = arith.constant 0 : index
      %28 = vector.load %arg7[%c0_35, %c0_36, %c0_37, %c0_38] : memref<2x4x2x128xf32, #tpu.memory_space<vmem>>, vector<2x4x2x128xf32>
      %cst_39 = arith.constant dense<0.000000e+00> : vector<2x4x2xf32>
      %29 = vector.multi_reduction <add>, %28, %cst_39 [3] : vector<2x4x2x128xf32> to vector<2x4x2xf32>
      %cst_40 = arith.constant dense<0.000000e+00> : vector<2x4xf32>
      %30 = vector.multi_reduction <add>, %29, %cst_40 [2] : vector<2x4x2xf32> to vector<2x4xf32>
      %31 = vector.shape_cast %30 : vector<2x4xf32> to vector<1x2x4xf32>
      %c0_41 = arith.constant 0 : index
      %c0_42 = arith.constant 0 : index
      %c0_43 = arith.constant 0 : index
      %32 = vector.load %arg4[%c0_41, %c0_42, %c0_43] : memref<1x2x4xf32, #tpu.memory_space<vmem>>, vector<1x2x4xf32>
      tpu.vector_store %arg4[%c0_41, %c0_42, %c0_43], %31 {strides = array<i32>} : memref<1x2x4xf32, #tpu.memory_space<vmem>>, vector<1x2x4xf32>,
      %c0_44 = arith.constant 0 : index
      %c0_45 = arith.constant 0 : index
      %c0_46 = arith.constant 0 : index
      %c0_47 = arith.constant 0 : index
      %33 = vector.load %arg8[%c0_44, %c0_45, %c0_46, %c0_47] : memref<2x4x2x128xf32, #tpu.memory_space<vmem>>, vector<2x4x2x128xf32>
      %cst_48 = arith.constant dense<0.000000e+00> : vector<2x4x2xf32>
      %34 = vector.multi_reduction <add>, %33, %cst_48 [3] : vector<2x4x2x128xf32> to vector<2x4x2xf32>
      %cst_49 = arith.constant dense<0.000000e+00> : vector<2x4xf32>
      %35 = vector.multi_reduction <add>, %34, %cst_49 [2] : vector<2x4x2xf32> to vector<2x4xf32>
      %36 = vector.shape_cast %35 : vector<2x4xf32> to vector<1x2x4xf32>
      %c0_50 = arith.constant 0 : index
      %c0_51 = arith.constant 0 : index
      %c0_52 = arith.constant 0 : index
      %37 = vector.load %arg5[%c0_50, %c0_51, %c0_52] : memref<1x2x4xf32, #tpu.memory_space<vmem>>, vector<1x2x4xf32>
      tpu.vector_store %arg5[%c0_50, %c0_51, %c0_52], %36 {strides = array<i32>} : memref<1x2x4xf32, #tpu.memory_space<vmem>>, vector<1x2x4xf32>,
      %c0_53 = arith.constant 0 : index
      %c0_54 = arith.constant 0 : index
      %c0_55 = arith.constant 0 : index
      %c0_56 = arith.constant 0 : index
      %38 = vector.load %arg9[%c0_53, %c0_54, %c0_55, %c0_56] : memref<2x4x2x128xf32, #tpu.memory_space<vmem>>, vector<2x4x2x128xf32>
      %cst_57 = arith.constant dense<0.000000e+00> : vector<2x4x2xf32>
      %39 = vector.multi_reduction <add>, %38, %cst_57 [3] : vector<2x4x2x128xf32> to vector<2x4x2xf32>
      %cst_58 = arith.constant dense<0.000000e+00> : vector<2x4xf32>
      %40 = vector.multi_reduction <add>, %39, %cst_58 [2] : vector<2x4x2xf32> to vector<2x4xf32>
      %41 = vector.shape_cast %40 : vector<2x4xf32> to vector<1x2x4xf32>
      %c0_59 = arith.constant 0 : index
      %c0_60 = arith.constant 0 : index
      %c0_61 = arith.constant 0 : index
      %42 = vector.load %arg6[%c0_59, %c0_60, %c0_61] : memref<1x2x4xf32, #tpu.memory_space<vmem>>, vector<1x2x4xf32>
      tpu.vector_store %arg6[%c0_59, %c0_60, %c0_61], %41 {strides = array<i32>} : memref<1x2x4xf32, #tpu.memory_space<vmem>>, vector<1x2x4xf32>,
    } else {
    }
    return
  }
  func.func @transform_0(%arg0: i32, %arg1: i32) -> (i32, i32, i32, i32) {
    %c1_i32 = arith.constant 1 : i32
    %0 = arith.muli %arg0, %c1_i32 : i32
    %1 = arith.addi %0, %arg1 : i32
    %c0_i32 = arith.constant 0 : i32
    %2 = arith.minsi %1, %c0_i32 : i32
    %c0_i32_0 = arith.constant 0 : i32
    %c0_i32_1 = arith.constant 0 : i32
    %c0_i32_2 = arith.constant 0 : i32
    %c0_i32_3 = arith.constant 0 : i32
    return %c0_i32_0, %c0_i32_1, %2, %c0_i32_2 : i32, i32, i32, i32
  }
  func.func @transform_1(%arg0: i32, %arg1: i32) -> (i32, i32, i32, i32) {
    %c1_i32 = arith.constant 1 : i32
    %0 = arith.muli %arg0, %c1_i32 : i32
    %1 = arith.addi %0, %arg1 : i32
    %c0_i32 = arith.constant 0 : i32
    %2 = arith.minsi %1, %c0_i32 : i32
    %c0_i32_0 = arith.constant 0 : i32
    %c0_i32_1 = arith.constant 0 : i32
    %c0_i32_2 = arith.constant 0 : i32
    %c0_i32_3 = arith.constant 0 : i32
    return %c0_i32_0, %c0_i32_1, %2, %c0_i32_2 : i32, i32, i32, i32
  }
  func.func @transform_2(%arg0: i32, %arg1: i32) -> (i32, i32, i32) {
    %c0_i32 = arith.constant 0 : i32
    %c0_i32_0 = arith.constant 0 : i32
    %c0_i32_1 = arith.constant 0 : i32
    return %arg0, %c0_i32, %c0_i32_0 : i32, i32, i32
  }
  func.func @transform_3(%arg0: i32, %arg1: i32) -> (i32, i32, i32) {
    %c0_i32 = arith.constant 0 : i32
    %c0_i32_0 = arith.constant 0 : i32
    %c0_i32_1 = arith.constant 0 : i32
    return %arg0, %c0_i32, %c0_i32_0 : i32, i32, i32
  }
  func.func @transform_4(%arg0: i32, %arg1: i32) -> (i32, i32, i32) {
    %c0_i32 = arith.constant 0 : i32
    %c0_i32_0 = arith.constant 0 : i32
    %c0_i32_1 = arith.constant 0 : i32
    return %arg0, %c0_i32, %c0_i32_0 : i32, i32, i32
  }
}

</mosaic_0001>

<llo_original>
// kernel: tpu_custom_call.1
$region0: #{tpu_custom_call.1}
  #allocation0 [shape = 'u32[]', space=smem, size = 0x4, offset = 0x4, fixed_abs, tag = 'smem constant byte address 0x4 - core index']
  #allocation1 [shape = 'u32[144,128]{1,0:T(1,128)}', space=vmem, size = 0x12000, scoped, tag = 'internal scratch']
  #allocation2 [shape = 'f32[2,4,2,128]{3,2,1,0:T(2,128)}', space=vmem, size = 0x2000, scoped, tag = 'scratch operand']
  #allocation3 [shape = 'f32[2,4,2,128]{3,2,1,0:T(2,128)}', space=vmem, size = 0x2000, scoped, tag = 'scratch operand']
  #allocation4 [shape = 'f32[2,4,2,128]{3,2,1,0:T(2,128)}', space=vmem, size = 0x2000, scoped, tag = 'scratch operand']
  %s0 = inlined_call_operand.hbm [shape: f32[2,4,2,128], index: 0, kind: input, shape index: {}]
  %s1 = inlined_call_operand.hbm [shape: f32[2,4,2,128], index: 1, kind: input, shape index: {}]
  %s2 = inlined_call_operand.hbm [shape: f32[1,2,4], index: 2, kind: output, shape index: {0}]
  %s3 = inlined_call_operand.hbm [shape: f32[1,2,4], index: 3, kind: output, shape index: {1}]
  %s4 = inlined_call_operand.hbm [shape: f32[1,2,4], index: 4, kind: output, shape index: {2}]
  %5 = xla_tuple %s2, %s3, %s4
  %s6 = sld [smem:[#allocation0]]
  $region50: #{tpu_custom_call.1} parent=0
    _
  %s8 = ssub.s32 1, %s6
  %s9 = scalar_select 0, %s8, %s6
  $region1: #{tpu_custom_call.1} parent=0
    #allocation5 [shape = 'u8[8192]{0}', space=vmem, size = 0x2000, scoped, tag = 'input window, operand 0, single buffered']
    #allocation6 [shape = 's32[1]{0}', space=sflag, size = 0x4, scoped, tag = 'scoped memory for tpu_custom_call.1']
    #allocation7 [shape = 's32[1]{0}', space=sflag, size = 0x4, scoped, tag = 'scoped memory for tpu_custom_call.1']
    #allocation8 [shape = 'u8[8192]{0}', space=vmem, size = 0x2000, scoped, tag = 'input window, operand 1, single buffered']
    #allocation9 [shape = 's32[1]{0}', space=sflag, size = 0x4, scoped, tag = 'scoped memory for tpu_custom_call.1']
    #allocation10 [shape = 'u8[1024]{0}', space=vmem, size = 0x400, scoped, tag = 'output window, operand 0, single buffered']
    #allocation11 [shape = 'u8[1024]{0}', space=vmem, size = 0x400, scoped, tag = 'output window, operand 1, single buffered']
    #allocation12 [shape = 's32[1]{0}', space=sflag, size = 0x4, scoped, tag = 'scoped memory for tpu_custom_call.1']
    #allocation13 [shape = 'u8[1024]{0}', space=vmem, size = 0x400, scoped, tag = 'output window, operand 2, single buffered']
    %10 = vsyncpa [#allocation6], 0
    %11 = vsyncpa [#allocation9], 0
    %12 = vsyncpa [#allocation7], 0
    %13 = vsyncpa [#allocation12], 0
    // Predicated region
    $region2: #{tpu_custom_call.1} parent=1 // pred_check
      _
    $region3: #{tpu_custom_call.1} parent=1 // pred_check_branch
      %15 = sbr.rel (0) target = $region5
    $region4: #{tpu_custom_call.1} parent=1 // pred_region
      %s16 = sadd.s32 0, 0
      %p17 = scmp.lt.s32.totalorder %s16, 0
      %s18 = scalar_select %p17, %s16, 0
      %s20 = ssub.s32 256, 256
      %21 = vsyncadd [#allocation6], %s20
      %s22 = smul.addr %s18, 32
      %s23 = scalar_lea.hbm %s0, %s22
      %s24 = sshll.u32 [#allocation5], 4
      %s25 = int_to_ptr.vmem [resolvable:$true] %s24
      %30 = dma.hbm_to_vmem [thread:$0]  %s23, 256, %s25, [#allocation6], 32, 32, 2
    $region5: #{tpu_custom_call.1} parent=1 // pred_fallthru
      _
    // Predicated region
    $region6: #{tpu_custom_call.1} parent=1 // pred_check
      _
    $region7: #{tpu_custom_call.1} parent=1 // pred_check_branch
      %32 = sbr.rel (0) target = $region9
    $region8: #{tpu_custom_call.1} parent=1 // pred_region
      %s33 = sadd.s32 0, 0
      %p34 = scmp.lt.s32.totalorder %s33, 0
      %s35 = scalar_select %p34, %s33, 0
      %s37 = ssub.s32 256, 256
      %38 = vsyncadd [#allocation9], %s37
      %s39 = smul.addr %s35, 32
      %s40 = scalar_lea.hbm %s1, %s39
      %s41 = sshll.u32 [#allocation8], 4
      %s42 = int_to_ptr.vmem [resolvable:$true] %s41
      %47 = dma.hbm_to_vmem [thread:$0]  %s40, 256, %s42, [#allocation9], 32, 32, 2
    $region9: #{tpu_custom_call.1} parent=1 // pred_fallthru
      _
    // Predicated region
    $region10: #{tpu_custom_call.1} parent=1 // pred_check
      _
    $region11: #{tpu_custom_call.1} parent=1 // pred_check_branch
      %49 = sbr.rel (0) target = $region13
    $region12: #{tpu_custom_call.1} parent=1 // pred_region
      %50 = dma.done [#allocation6], 256
    $region13: #{tpu_custom_call.1} parent=1 // pred_fallthru
      _
    // Predicated region
    $region14: #{tpu_custom_call.1} parent=1 // pred_check
      _
    $region15: #{tpu_custom_call.1} parent=1 // pred_check_branch
      %52 = sbr.rel (0) target = $region17
    $region16: #{tpu_custom_call.1} parent=1 // pred_region
      %53 = dma.done [#allocation9], 256
    $region17: #{tpu_custom_call.1} parent=1 // pred_fallthru
      _
    %s54 = sadd.s32 0, 0
    %p55 = scmp.lt.s32.totalorder %s54, 0
    %s56 = scalar_select %p55, %s54, 0
    %s57 = sadd.s32 0, 0
    %p58 = scmp.lt.s32.totalorder %s57, 0
    %s59 = scalar_select %p58, %s57, 0
    %p60 = scmp.eq.s32.totalorder 0, 0
    // Predicated region
    $region18: #{tpu_custom_call.1} parent=1 // pred_check
      %p61 = pneg %p60
    $region19: #{tpu_custom_call.1} parent=1 // pred_check_branch
      %63 = sbr.rel (%p61) target = $region21
    $region20: #{tpu_custom_call.1} parent=1 // pred_region
      %64 = vst [vmem:[#allocation2] sm:$0x3] 0.0
      %65 = vst [vmem:[#allocation2 + $0x2] sm:$0x3] 0.0
      %66 = vst [vmem:[#allocation2 + $0x4] sm:$0x3] 0.0
      %67 = vst [vmem:[#allocation2 + $0x6] sm:$0x3] 0.0
      %68 = vst [vmem:[#allocation2 + $0x8] sm:$0x3] 0.0
      %69 = vst [vmem:[#allocation2 + $0xa] sm:$0x3] 0.0
      %70 = vst [vmem:[#allocation2 + $0xc] sm:$0x3] 0.0
      %71 = vst [vmem:[#allocation2 + $0xe] sm:$0x3] 0.0
      %72 = vst [vmem:[#allocation3] sm:$0x3] 0.0
      %73 = vst [vmem:[#allocation3 + $0x2] sm:$0x3] 0.0
      %74 = vst [vmem:[#allocation3 + $0x4] sm:$0x3] 0.0
      %75 = vst [vmem:[#allocation3 + $0x6] sm:$0x3] 0.0
      %76 = vst [vmem:[#allocation3 + $0x8] sm:$0x3] 0.0
      %77 = vst [vmem:[#allocation3 + $0xa] sm:$0x3] 0.0
      %78 = vst [vmem:[#allocation3 + $0xc] sm:$0x3] 0.0
      %79 = vst [vmem:[#allocation3 + $0xe] sm:$0x3] 0.0
      %80 = vst [vmem:[#allocation4] sm:$0x3] 0.0
      %81 = vst [vmem:[#allocation4 + $0x2] sm:$0x3] 0.0
      %82 = vst [vmem:[#allocation4 + $0x4] sm:$0x3] 0.0
      %83 = vst [vmem:[#allocation4 + $0x6] sm:$0x3] 0.0
      %84 = vst [vmem:[#allocation4 + $0x8] sm:$0x3] 0.0
      %85 = vst [vmem:[#allocation4 + $0xa] sm:$0x3] 0.0
      %86 = vst [vmem:[#allocation4 + $0xc] sm:$0x3] 0.0
      %87 = vst [vmem:[#allocation4 + $0xe] sm:$0x3] 0.0
    $region21: #{tpu_custom_call.1} parent=1 // pred_fallthru
      _
    %v88 = vld [vmem:[#allocation5] sm:$0x3]
    %v89 = vld [vmem:[#allocation5 + $0x2] sm:$0x3]
    %v90 = vld [vmem:[#allocation5 + $0x4] sm:$0x3]
    %v91 = vld [vmem:[#allocation5 + $0x6] sm:$0x3]
    %v92 = vld [vmem:[#allocation5 + $0x8] sm:$0x3]
    %v93 = vld [vmem:[#allocation5 + $0xa] sm:$0x3]
    %v94 = vld [vmem:[#allocation5 + $0xc] sm:$0x3]
    %v95 = vld [vmem:[#allocation5 + $0xe] sm:$0x3]
    %v96 = vld [vmem:[#allocation8] sm:$0x3]
    %v97 = vld [vmem:[#allocation8 + $0x2] sm:$0x3]
    %v98 = vld [vmem:[#allocation8 + $0x4] sm:$0x3]
    %v99 = vld [vmem:[#allocation8 + $0x6] sm:$0x3]
    %v100 = vld [vmem:[#allocation8 + $0x8] sm:$0x3]
    %v101 = vld [vmem:[#allocation8 + $0xa] sm:$0x3]
    %v102 = vld [vmem:[#allocation8 + $0xc] sm:$0x3]
    %v103 = vld [vmem:[#allocation8 + $0xe] sm:$0x3]
    %vm104 = vcmask 1041408
    %v105 = vsel %vm104, %v88, -inf
    %v106 = vsel %vm104, %v89, -inf
    %v107 = vsel %vm104, %v90, -inf
    %v108 = vmax.f32 %v105, %v107
    %v109 = vsel %vm104, %v91, -inf
    %v110 = vmax.f32 %v106, %v109
    %v111 = vmax.f32 %v108, %v110
    %v112 = vsel %vm104, %v92, -inf
    %v113 = vsel %vm104, %v93, -inf
    %v114 = vsel %vm104, %v94, -inf
    %v115 = vmax.f32 %v112, %v114
    %v116 = vsel %vm104, %v95, -inf
    %v117 = vmax.f32 %v113, %v116
    %v118 = vmax.f32 %v115, %v117
    %v119 = vsub.f32 %v88, %v111
    %v120 = vsub.f32 %v89, %v111
    %v121 = vsub.f32 %v90, %v111
    %v122 = vsub.f32 %v91, %v111
    %v123 = vsub.f32 %v92, %v118
    %v124 = vsub.f32 %v93, %v118
    %v125 = vsub.f32 %v94, %v118
    %v126 = vsub.f32 %v95, %v118
    %v127 = vmul.f32 %v119, 1.442695
    %v128 = vpow.pop %v127
    %v129 = vmul.f32 %v120, 1.442695
    %v130 = vpow.pop %v129
    %v131 = vmul.f32 %v121, 1.442695
    %v132 = vpow.pop %v131
    %v133 = vmul.f32 %v122, 1.442695
    %v134 = vpow.pop %v133
    %v135 = vmul.f32 %v123, 1.442695
    %v136 = vpow.pop %v135
    %v137 = vmul.f32 %v124, 1.442695
    %v138 = vpow.pop %v137
    %v139 = vmul.f32 %v125, 1.442695
    %v140 = vpow.pop %v139
    %v141 = vmul.f32 %v126, 1.442695
    %v142 = vpow.pop %v141
    %v143 = vsel %vm104, %v128, 0.0
    %v144 = vsel %vm104, %v130, 0.0
    %v145 = vadd.f32 %v143, %v144
    %v146 = vsel %vm104, %v132, 0.0
    %v147 = vadd.f32 %v145, %v146
    %v148 = vsel %vm104, %v134, 0.0
    %v149 = vadd.f32 %v147, %v148
    %v150 = vsel %vm104, %v136, 0.0
    %v151 = vsel %vm104, %v138, 0.0
    %v152 = vadd.f32 %v150, %v151
    %v153 = vsel %vm104, %v140, 0.0
    %v154 = vadd.f32 %v152, %v153
    %v155 = vsel %vm104, %v142, 0.0
    %v156 = vadd.f32 %v154, %v155
    %v157 = vrcp.pop %v149
    %v158 = vrcp.pop %v156
    %v159 = vmul.f32 %v128, %v157
    %v160 = vmul.f32 %v130, %v157
    %v161 = vmul.f32 %v132, %v157
    %v162 = vmul.f32 %v134, %v157
    %v163 = vmul.f32 %v136, %v158
    %v164 = vmul.f32 %v138, %v158
    %v165 = vmul.f32 %v140, %v158
    %v166 = vmul.f32 %v142, %v158
    %v167 = vld [vmem:[#allocation2] sm:$0x3]
    %v168 = vld [vmem:[#allocation2 + $0x2] sm:$0x3]
    %v169 = vld [vmem:[#allocation2 + $0x4] sm:$0x3]
    %v170 = vld [vmem:[#allocation2 + $0x6] sm:$0x3]
    %v171 = vld [vmem:[#allocation2 + $0x8] sm:$0x3]
    %v172 = vld [vmem:[#allocation2 + $0xa] sm:$0x3]
    %v173 = vld [vmem:[#allocation2 + $0xc] sm:$0x3]
    %v174 = vld [vmem:[#allocation2 + $0xe] sm:$0x3]
    %v175 = vmul.f32 %v159, %v96
    %v176 = vmul.f32 %v160, %v97
    %v177 = vmul.f32 %v161, %v98
    %v178 = vmul.f32 %v162, %v99
    %v179 = vmul.f32 %v163, %v100
    %v180 = vmul.f32 %v164, %v101
    %v181 = vmul.f32 %v165, %v102
    %v182 = vmul.f32 %v166, %v103
    %v183 = vadd.f32 %v167, %v175
    %v184 = vadd.f32 %v168, %v176
    %v185 = vadd.f32 %v169, %v177
    %v186 = vadd.f32 %v170, %v178
    %v187 = vadd.f32 %v171, %v179
    %v188 = vadd.f32 %v172, %v180
    %v189 = vadd.f32 %v173, %v181
    %v190 = vadd.f32 %v174, %v182
    %191 = vst [vmem:[#allocation2] sm:$0x3] %v183
    %192 = vst [vmem:[#allocation2 + $0x2] sm:$0x3] %v184
    %193 = vst [vmem:[#allocation2 + $0x4] sm:$0x3] %v185
    %194 = vst [vmem:[#allocation2 + $0x6] sm:$0x3] %v186
    %195 = vst [vmem:[#allocation2 + $0x8] sm:$0x3] %v187
    %196 = vst [vmem:[#allocation2 + $0xa] sm:$0x3] %v188
    %197 = vst [vmem:[#allocation2 + $0xc] sm:$0x3] %v189
    %198 = vst [vmem:[#allocation2 + $0xe] sm:$0x3] %v190
    %v199 = vld [vmem:[#allocation3] sm:$0x3]
    %v200 = vld [vmem:[#allocation3 + $0x2] sm:$0x3]
    %v201 = vld [vmem:[#allocation3 + $0x4] sm:$0x3]
    %v202 = vld [vmem:[#allocation3 + $0x6] sm:$0x3]
    %v203 = vld [vmem:[#allocation3 + $0x8] sm:$0x3]
    %v204 = vld [vmem:[#allocation3 + $0xa] sm:$0x3]
    %v205 = vld [vmem:[#allocation3 + $0xc] sm:$0x3]
    %v206 = vld [vmem:[#allocation3 + $0xe] sm:$0x3]
    %v207 = vadd.f32 %v199, %v159
    %v208 = vadd.f32 %v200, %v160
    %v209 = vadd.f32 %v201, %v161
    %v210 = vadd.f32 %v202, %v162
    %v211 = vadd.f32 %v203, %v163
    %v212 = vadd.f32 %v204, %v164
    %v213 = vadd.f32 %v205, %v165
    %v214 = vadd.f32 %v206, %v166
    %215 = vst [vmem:[#allocation3] sm:$0x3] %v207
    %216 = vst [vmem:[#allocation3 + $0x2] sm:$0x3] %v208
    %217 = vst [vmem:[#allocation3 + $0x4] sm:$0x3] %v209
    %218 = vst [vmem:[#allocation3 + $0x6] sm:$0x3] %v210
    %219 = vst [vmem:[#allocation3 + $0x8] sm:$0x3] %v211
    %220 = vst [vmem:[#allocation3 + $0xa] sm:$0x3] %v212
    %221 = vst [vmem:[#allocation3 + $0xc] sm:$0x3] %v213
    %222 = vst [vmem:[#allocation3 + $0xe] sm:$0x3] %v214
    %v223 = vld [vmem:[#allocation4] sm:$0x3]
    %v224 = vld [vmem:[#allocation4 + $0x2] sm:$0x3]
    %v225 = vld [vmem:[#allocation4 + $0x4] sm:$0x3]
    %v226 = vld [vmem:[#allocation4 + $0x6] sm:$0x3]
    %v227 = vld [vmem:[#allocation4 + $0x8] sm:$0x3]
    %v228 = vld [vmem:[#allocation4 + $0xa] sm:$0x3]
    %v229 = vld [vmem:[#allocation4 + $0xc] sm:$0x3]
    %v230 = vld [vmem:[#allocation4 + $0xe] sm:$0x3]
    %v231 = vadd.f32 %v223, %v96
    %v232 = vadd.f32 %v224, %v97
    %v233 = vadd.f32 %v225, %v98
    %v234 = vadd.f32 %v226, %v99
    %v235 = vadd.f32 %v227, %v100
    %v236 = vadd.f32 %v228, %v101
    %v237 = vadd.f32 %v229, %v102
    %v238 = vadd.f32 %v230, %v103
    %239 = vst [vmem:[#allocation4] sm:$0x3] %v231
    %240 = vst [vmem:[#allocation4 + $0x2] sm:$0x3] %v232
    %241 = vst [vmem:[#allocation4 + $0x4] sm:$0x3] %v233
    %242 = vst [vmem:[#allocation4 + $0x6] sm:$0x3] %v234
    %243 = vst [vmem:[#allocation4 + $0x8] sm:$0x3] %v235
    %244 = vst [vmem:[#allocation4 + $0xa] sm:$0x3] %v236
    %245 = vst [vmem:[#allocation4 + $0xc] sm:$0x3] %v237
    %246 = vst [vmem:[#allocation4 + $0xe] sm:$0x3] %v238
    // Predicated region
    $region22: #{tpu_custom_call.1} parent=1 // pred_check
      %p247 = pneg %p60
    $region23: #{tpu_custom_call.1} parent=1 // pred_check_branch
      %249 = sbr.rel (%p247) target = $region25
    $region24: #{tpu_custom_call.1} parent=1 // pred_region
      %v250 = vld [vmem:[#allocation2] sm:$0x3]
      %v251 = vld [vmem:[#allocation2 + $0x2] sm:$0x3]
      %v252 = vld [vmem:[#allocation2 + $0x4] sm:$0x3]
      %v253 = vld [vmem:[#allocation2 + $0x6] sm:$0x3]
      %v254 = vld [vmem:[#allocation2 + $0x8] sm:$0x3]
      %v255 = vld [vmem:[#allocation2 + $0xa] sm:$0x3]
      %v256 = vld [vmem:[#allocation2 + $0xc] sm:$0x3]
      %v257 = vld [vmem:[#allocation2 + $0xe] sm:$0x3]
      %v258 = vsel %vm104, %v250, 0.0
      %259 = vadd.xlane.f32.xlu0 %v258
      %v260 = vpop.xlane.xlu0 %259
      %v261 = vsel %vm104, %v251, 0.0
      %262 = vadd.xlane.f32.xlu0 %v261
      %v263 = vpop.xlane.xlu0 %262
      %v264 = vsel %vm104, %v252, 0.0
      %265 = vadd.xlane.f32.xlu0 %v264
      %v266 = vpop.xlane.xlu0 %265
      %v267 = vsel %vm104, %v253, 0.0
      %268 = vadd.xlane.f32.xlu0 %v267
      %v269 = vpop.xlane.xlu0 %268
      %v270 = vsel %vm104, %v254, 0.0
      %271 = vadd.xlane.f32.xlu0 %v270
      %v272 = vpop.xlane.xlu0 %271
      %v273 = vsel %vm104, %v255, 0.0
      %274 = vadd.xlane.f32.xlu0 %v273
      %v275 = vpop.xlane.xlu0 %274
      %v276 = vsel %vm104, %v256, 0.0
      %277 = vadd.xlane.f32.xlu0 %v276
      %v278 = vpop.xlane.xlu0 %277
      %v279 = vsel %vm104, %v257, 0.0
      %280 = vadd.xlane.f32.xlu0 %v279
      %v281 = vpop.xlane.xlu0 %280
      %v290 = vlaneseq
      %v291 = vand.u32 %v290, 127
      %v292 = vlaneseq
      %v293 = vshrl.u32 %v292, 7
      %v294 = vsub.s32 %v291, %v293
      %v295 = vrot.slane %v260, %v294
      %v296 = vlaneseq
      %v297 = vshrl.u32 %v296, 7
      %v298 = vsub.s32 %v291, %v297
      %v299 = vrot.slane %v263, %v298
      %v300 = vlaneseq
      %v301 = vshrl.u32 %v300, 7
      %v302 = vsub.s32 %v291, %v301
      %v303 = vrot.slane %v266, %v302
      %v304 = vlaneseq
      %v305 = vshrl.u32 %v304, 7
      %v306 = vsub.s32 %v291, %v305
      %v307 = vrot.slane %v269, %v306
      %v308 = vlaneseq
      %v309 = vshrl.u32 %v308, 7
      %v310 = vsub.s32 %v291, %v309
      %v311 = vrot.slane %v272, %v310
      %v312 = vlaneseq
      %v313 = vshrl.u32 %v312, 7
      %v314 = vsub.s32 %v291, %v313
      %v315 = vrot.slane %v275, %v314
      %v316 = vlaneseq
      %v317 = vshrl.u32 %v316, 7
      %v318 = vsub.s32 %v291, %v317
      %v319 = vrot.slane %v278, %v318
      %v320 = vlaneseq
      %v321 = vshrl.u32 %v320, 7
      %v322 = vsub.s32 %v291, %v321
      %v323 = vrot.slane %v281, %v322
      %vm324 = vcmask 1041409
      %v325 = vsel %vm324, %v299, %v295
      %vm326 = vcmask 1042434
      %v327 = vsel %vm326, %v303, %v325
      %vm328 = vcmask 1043459
      %v329 = vsel %vm328, %v307, %v327
      %v330 = vsel %vm324, %v315, %v311
      %v331 = vsel %vm326, %v319, %v330
      %v332 = vsel %vm328, %v323, %v331
      %vm335 = vcmask 11264
      %v336 = vsel %vm335, %v329, 0.0
      %337 = vadd.xlane.f32.xlu0 %v336
      %v338 = vpop.xlane.xlu0 %337
      %v339 = vsel %vm335, %v332, 0.0
      %340 = vadd.xlane.f32.xlu0 %v339
      %v341 = vpop.xlane.xlu0 %340
      %v344 = vlaneseq
      %v345 = vshrl.u32 %v344, 7
      %v346 = vsub.s32 %v291, %v345
      %v347 = vrot.slane %v338, %v346
      %v348 = vlaneseq
      %v349 = vshrl.u32 %v348, 7
      %v350 = vsub.s32 %v291, %v349
      %v351 = vrot.slane %v341, %v350
      %v352 = vsel %vm324, %v351, %v347
      %vm354 = vcmask 25600
      %355 = vst.msk [vmem:[#allocation10] sm:$0x3] %vm354, %v352
      %v356 = vld [vmem:[#allocation3] sm:$0x3]
      %v357 = vld [vmem:[#allocation3 + $0x2] sm:$0x3]
      %v358 = vld [vmem:[#allocation3 + $0x4] sm:$0x3]
      %v359 = vld [vmem:[#allocation3 + $0x6] sm:$0x3]
      %v360 = vld [vmem:[#allocation3 + $0x8] sm:$0x3]
      %v361 = vld [vmem:[#allocation3 + $0xa] sm:$0x3]
      %v362 = vld [vmem:[#allocation3 + $0xc] sm:$0x3]
      %v363 = vld [vmem:[#allocation3 + $0xe] sm:$0x3]
      %v364 = vsel %vm104, %v356, 0.0
      %365 = vadd.xlane.f32.xlu0 %v364
      %v366 = vpop.xlane.xlu0 %365
      %v367 = vsel %vm104, %v357, 0.0
      %368 = vadd.xlane.f32.xlu0 %v367
      %v369 = vpop.xlane.xlu0 %368
      %v370 = vsel %vm104, %v358, 0.0
      %371 = vadd.xlane.f32.xlu0 %v370
      %v372 = vpop.xlane.xlu0 %371
      %v373 = vsel %vm104, %v359, 0.0
      %374 = vadd.xlane.f32.xlu0 %v373
      %v375 = vpop.xlane.xlu0 %374
      %v376 = vsel %vm104, %v360, 0.0
      %377 = vadd.xlane.f32.xlu0 %v376
      %v378 = vpop.xlane.xlu0 %377
      %v379 = vsel %vm104, %v361, 0.0
      %380 = vadd.xlane.f32.xlu0 %v379
      %v381 = vpop.xlane.xlu0 %380
      %v382 = vsel %vm104, %v362, 0.0
      %383 = vadd.xlane.f32.xlu0 %v382
      %v384 = vpop.xlane.xlu0 %383
      %v385 = vsel %vm104, %v363, 0.0
      %386 = vadd.xlane.f32.xlu0 %v385
      %v387 = vpop.xlane.xlu0 %386
      %v396 = vlaneseq
      %v397 = vshrl.u32 %v396, 7
      %v398 = vsub.s32 %v291, %v397
      %v399 = vrot.slane %v366, %v398
      %v400 = vlaneseq
      %v401 = vshrl.u32 %v400, 7
      %v402 = vsub.s32 %v291, %v401
      %v403 = vrot.slane %v369, %v402
      %v404 = vlaneseq
      %v405 = vshrl.u32 %v404, 7
      %v406 = vsub.s32 %v291, %v405
      %v407 = vrot.slane %v372, %v406
      %v408 = vlaneseq
      %v409 = vshrl.u32 %v408, 7
      %v410 = vsub.s32 %v291, %v409
      %v411 = vrot.slane %v375, %v410
      %v412 = vlaneseq
      %v413 = vshrl.u32 %v412, 7
      %v414 = vsub.s32 %v291, %v413
      %v415 = vrot.slane %v378, %v414
      %v416 = vlaneseq
      %v417 = vshrl.u32 %v416, 7
      %v418 = vsub.s32 %v291, %v417
      %v419 = vrot.slane %v381, %v418
      %v420 = vlaneseq
      %v421 = vshrl.u32 %v420, 7
      %v422 = vsub.s32 %v291, %v421
      %v423 = vrot.slane %v384, %v422
      %v424 = vlaneseq
      %v425 = vshrl.u32 %v424, 7
      %v426 = vsub.s32 %v291, %v425
      %v427 = vrot.slane %v387, %v426
      %v428 = vsel %vm324, %v403, %v399
      %v429 = vsel %vm326, %v407, %v428
      %v430 = vsel %vm328, %v411, %v429
      %v431 = vsel %vm324, %v419, %v415
      %v432 = vsel %vm326, %v423, %v431
      %v433 = vsel %vm328, %v427, %v432
      %v436 = vsel %vm335, %v430, 0.0
      %437 = vadd.xlane.f32.xlu0 %v436
      %v438 = vpop.xlane.xlu0 %437
      %v439 = vsel %vm335, %v433, 0.0
      %440 = vadd.xlane.f32.xlu0 %v439
      %v441 = vpop.xlane.xlu0 %440
      %v444 = vlaneseq
      %v445 = vshrl.u32 %v444, 7
      %v446 = vsub.s32 %v291, %v445
      %v447 = vrot.slane %v438, %v446
      %v448 = vlaneseq
      %v449 = vshrl.u32 %v448, 7
      %v450 = vsub.s32 %v291, %v449
      %v451 = vrot.slane %v441, %v450
      %v452 = vsel %vm324, %v451, %v447
      %454 = vst.msk [vmem:[#allocation11] sm:$0x3] %vm354, %v452
      %v455 = vld [vmem:[#allocation4] sm:$0x3]
      %v456 = vld [vmem:[#allocation4 + $0x2] sm:$0x3]
      %v457 = vld [vmem:[#allocation4 + $0x4] sm:$0x3]
      %v458 = vld [vmem:[#allocation4 + $0x6] sm:$0x3]
      %v459 = vld [vmem:[#allocation4 + $0x8] sm:$0x3]
      %v460 = vld [vmem:[#allocation4 + $0xa] sm:$0x3]
      %v461 = vld [vmem:[#allocation4 + $0xc] sm:$0x3]
      %v462 = vld [vmem:[#allocation4 + $0xe] sm:$0x3]
      %v463 = vsel %vm104, %v455, 0.0
      %464 = vadd.xlane.f32.xlu0 %v463
      %v465 = vpop.xlane.xlu0 %464
      %v466 = vsel %vm104, %v456, 0.0
      %467 = vadd.xlane.f32.xlu0 %v466
      %v468 = vpop.xlane.xlu0 %467
      %v469 = vsel %vm104, %v457, 0.0
      %470 = vadd.xlane.f32.xlu0 %v469
      %v471 = vpop.xlane.xlu0 %470
      %v472 = vsel %vm104, %v458, 0.0
      %473 = vadd.xlane.f32.xlu0 %v472
      %v474 = vpop.xlane.xlu0 %473
      %v475 = vsel %vm104, %v459, 0.0
      %476 = vadd.xlane.f32.xlu0 %v475
      %v477 = vpop.xlane.xlu0 %476
      %v478 = vsel %vm104, %v460, 0.0
      %479 = vadd.xlane.f32.xlu0 %v478
      %v480 = vpop.xlane.xlu0 %479
      %v481 = vsel %vm104, %v461, 0.0
      %482 = vadd.xlane.f32.xlu0 %v481
      %v483 = vpop.xlane.xlu0 %482
      %v484 = vsel %vm104, %v462, 0.0
      %485 = vadd.xlane.f32.xlu0 %v484
      %v486 = vpop.xlane.xlu0 %485
      %v495 = vlaneseq
      %v496 = vshrl.u32 %v495, 7
      %v497 = vsub.s32 %v291, %v496
      %v498 = vrot.slane %v465, %v497
      %v499 = vlaneseq
      %v500 = vshrl.u32 %v499, 7
      %v501 = vsub.s32 %v291, %v500
      %v502 = vrot.slane %v468, %v501
      %v503 = vlaneseq
      %v504 = vshrl.u32 %v503, 7
      %v505 = vsub.s32 %v291, %v504
      %v506 = vrot.slane %v471, %v505
      %v507 = vlaneseq
      %v508 = vshrl.u32 %v507, 7
      %v509 = vsub.s32 %v291, %v508
      %v510 = vrot.slane %v474, %v509
      %v511 = vlaneseq
      %v512 = vshrl.u32 %v511, 7
      %v513 = vsub.s32 %v291, %v512
      %v514 = vrot.slane %v477, %v513
      %v515 = vlaneseq
      %v516 = vshrl.u32 %v515, 7
      %v517 = vsub.s32 %v291, %v516
      %v518 = vrot.slane %v480, %v517
      %v519 = vlaneseq
      %v520 = vshrl.u32 %v519, 7
      %v521 = vsub.s32 %v291, %v520
      %v522 = vrot.slane %v483, %v521
      %v523 = vlaneseq
      %v524 = vshrl.u32 %v523, 7
      %v525 = vsub.s32 %v291, %v524
      %v526 = vrot.slane %v486, %v525
      %v527 = vsel %vm324, %v502, %v498
      %v528 = vsel %vm326, %v506, %v527
      %v529 = vsel %vm328, %v510, %v528
      %v530 = vsel %vm324, %v518, %v514
      %v531 = vsel %vm326, %v522, %v530
      %v532 = vsel %vm328, %v526, %v531
      %v535 = vsel %vm335, %v529, 0.0
      %536 = vadd.xlane.f32.xlu0 %v535
      %v537 = vpop.xlane.xlu0 %536
      %v538 = vsel %vm335, %v532, 0.0
      %539 = vadd.xlane.f32.xlu0 %v538
      %v540 = vpop.xlane.xlu0 %539
      %v543 = vlaneseq
      %v544 = vshrl.u32 %v543, 7
      %v545 = vsub.s32 %v291, %v544
      %v546 = vrot.slane %v537, %v545
      %v547 = vlaneseq
      %v548 = vshrl.u32 %v547, 7
      %v549 = vsub.s32 %v291, %v548
      %v550 = vrot.slane %v540, %v549
      %v551 = vsel %vm324, %v550, %v546
      %553 = vst.msk [vmem:[#allocation13] sm:$0x3] %vm354, %v551
    $region25: #{tpu_custom_call.1} parent=1 // pred_fallthru
      _
    // Predicated region
    $region26: #{tpu_custom_call.1} parent=1 // pred_check
      _
    $region27: #{tpu_custom_call.1} parent=1 // pred_check_branch
      %555 = sbr.rel (0) target = $region29
    $region28: #{tpu_custom_call.1} parent=1 // pred_region
      %s557 = ssub.s32 32, 32
      %558 = vsyncadd [#allocation7], %s557
      %s560 = sshll.u32 [#allocation10], 4
      %s561 = int_to_ptr.vmem [resolvable:$true] %s560
      %563 = dma.vmem_to_hbm [thread:$0]  %s561, 32, %s2, [#allocation7]
    $region29: #{tpu_custom_call.1} parent=1 // pred_fallthru
      _
    // Predicated region
    $region30: #{tpu_custom_call.1} parent=1 // pred_check
      _
    $region31: #{tpu_custom_call.1} parent=1 // pred_check_branch
      %565 = sbr.rel (0) target = $region33
    $region32: #{tpu_custom_call.1} parent=1 // pred_region
      %s567 = ssub.s32 32, 32
      %568 = vsyncadd [#allocation12], %s567
      %s570 = sshll.u32 [#allocation11], 4
      %s571 = int_to_ptr.vmem [resolvable:$true] %s570
      %573 = dma.vmem_to_hbm [thread:$0]  %s571, 32, %s3, [#allocation12]
    $region33: #{tpu_custom_call.1} parent=1 // pred_fallthru
      _
    // Predicated region
    $region34: #{tpu_custom_call.1} parent=1 // pred_check
      _
    $region35: #{tpu_custom_call.1} parent=1 // pred_check_branch
      %575 = sbr.rel (0) target = $region37
    $region36: #{tpu_custom_call.1} parent=1 // pred_region
      %s577 = ssub.s32 32, 32
      %578 = vsyncadd [#allocation12], %s577
      %s580 = sshll.u32 [#allocation13], 4
      %s581 = int_to_ptr.vmem [resolvable:$true] %s580
      %583 = dma.vmem_to_hbm [thread:$0]  %s581, 32, %s4, [#allocation12]
    $region37: #{tpu_custom_call.1} parent=1 // pred_fallthru
      _
    // Predicated region
    $region38: #{tpu_custom_call.1} parent=1 // pred_check
      _
    $region39: #{tpu_custom_call.1} parent=1 // pred_check_branch
      %585 = sbr.rel (0) target = $region41
    $region40: #{tpu_custom_call.1} parent=1 // pred_region
      %586 = dma.done [#allocation7], 32
    $region41: #{tpu_custom_call.1} parent=1 // pred_fallthru
      _
    // Predicated region
    $region42: #{tpu_custom_call.1} parent=1 // pred_check
      _
    $region43: #{tpu_custom_call.1} parent=1 // pred_check_branch
      %588 = sbr.rel (0) target = $region45
    $region44: #{tpu_custom_call.1} parent=1 // pred_region
      %589 = dma.done [#allocation12], 32
    $region45: #{tpu_custom_call.1} parent=1 // pred_fallthru
      _
    // Predicated region
    $region46: #{tpu_custom_call.1} parent=1 // pred_check
      _
    $region47: #{tpu_custom_call.1} parent=1 // pred_check_branch
      %591 = sbr.rel (0) target = $region49
    $region48: #{tpu_custom_call.1} parent=1 // pred_region
      %592 = dma.done [#allocation12], 32
    $region49: #{tpu_custom_call.1} parent=1 // pred_fallthru
      _
    %593 = vsyncpa [#allocation6], 1
    %594 = vsyncpa [#allocation9], 1
    %595 = vsyncpa [#allocation7], 1
    %596 = vsyncpa [#allocation12], 1

</llo_original>
